<compile_context>
chip_gen: v7x
topology: tpu7x:2x2x1
jax: 0.10.0
libtpu: 0.0.40
codegen_flags: <defaults>
</compile_context>

<pallas_src>
import functools

import jax
import jax.numpy as jnp
from jax.experimental import pallas as pl
from jax.experimental.pallas import tpu as pltpu

EPS = 1e-5  # nn.BatchNorm2d default eps


# ---------------------------------------------------------------------------
# Fused kernel: (BN -> relu -> 1x1 conv) x 3 + skip, then bilinear resize to 19x19
# ---------------------------------------------------------------------------
def _fused_kernel(x_ref, p_ref, k_hbm, o_ref, k_vmem, k_sem, *, n_batch, hw):
    # x_ref : (N, C, H*W)  input, NCHW-flattened (VMEM)
    # p_ref : (C, C+3)     packed [conv_W (out,in) | gamma | beta | conv_bias] (VMEM)
    # k_hbm : (H*W, 361)   bf16 kron(Mh, Mw)^T resize matrix, left in HBM (pl.ANY)
    # o_ref : (N*C, 361)   output (row n*C+c = channel c of batch n)
    # k_vmem: (H*W, 361)   bf16 VMEM landing buffer for kmat
    # k_sem : DMA semaphore
    C = x_ref.shape[1]

    # Kick off the dominant DMA now; it overlaps the whole residual-block compute.
    kcp = pltpu.make_async_copy(k_hbm, k_vmem, k_sem)
    kcp.start()

    p = p_ref[...]
    w = p[:, :C]                      # (C, C)   conv weight, rows = out channel
    gamma = p[:, C:C + 1]             # (C, 1)
    beta = p[:, C + 1:C + 2]          # (C, 1)
    bias = p[:, C + 2:C + 3]          # (C, 1)
    w_cols = [w[:, c:c + 1] for c in range(C)]   # hoisted once, reused by all 3 stages

    # Lane-dense activation: channels on sublanes, all N*H*W pixels on lanes.
    v = jnp.concatenate([x_ref[n].astype(jnp.float32) for n in range(n_batch)],
                        axis=1)                                   # (C, N*H*W)
    y = v                                                         # skip connection
    inv_p = 1.0 / float(n_batch * hw)

    def bn_relu_conv(v):
        # training-mode BN stats per channel (sublane row) over all pixels (lanes);
        # two independent lane reductions, var = E[x^2] - mean^2 (shorter critical path).
        s1 = jnp.sum(v, axis=1, keepdims=True)                    # (C, 1)
        s2 = jnp.sum(v * v, axis=1, keepdims=True)                # (C, 1)
        mean = s1 * inv_p
        var = s2 * inv_p - mean * mean                            # biased (population) var
        scale = gamma * jax.lax.rsqrt(var + EPS)                  # EUP rsqrt
        shift = beta - mean * scale
        vn = jnp.maximum(v * scale + shift, 0.0)                  # folded BN + ReLU
        # 1x1 conv == 4x4 channel mix: far too small for the MXU, do it on the VPU.
        out = bias                                                # (C, 1) -> broadcasts
        for c in range(C):
            out = out + w_cols[c] * vn[c:c + 1, :]                # (C,1)*(1,P) -> (C,P)
        return out

    v = bn_relu_conv(v)
    v = bn_relu_conv(v)
    v = bn_relu_conv(v)
    r = v + y                                                     # (C, N*H*W)

    # Restack batches onto sublanes: (N*C, H*W); lane slices are 128-aligned (HW = 256).
    s = jnp.concatenate([r[:, n * hw:(n + 1) * hw] for n in range(n_batch)], axis=0)

    # Bilinear resize: one (N*C, HW) @ (HW, 361) bf16 MXU matmul, f32 accumulation.
    kcp.wait()
    res = jnp.dot(s.astype(jnp.bfloat16), k_vmem[...],
                  preferred_element_type=jnp.float32)             # (N*C, 361)
    # TODO(synk): at production sizes, pad the output lane dim 361->384 (avoids masked tail
    # stores) and add a "parallel" grid axis (N or output tiles) so v7x's 2nd TensorCore is
    # used; not worth the ~0.35us/step overhead at 2x4x16x16.
    o_ref[...] = res.astype(o_ref.dtype)


# ---------------------------------------------------------------------------
# Glue: interpolation matrices (PyTorch align_corners=False semantics)
# ---------------------------------------------------------------------------
def bilinear_matrix(in_size, out_size):
    scale = in_size / out_size
    dst = jnp.arange(out_size, dtype=jnp.float32)
    src = jnp.maximum((dst + 0.5) * scale - 0.5, 0.0)
    i0 = jnp.minimum(jnp.floor(src).astype(jnp.int32), in_size - 1)
    i1 = jnp.minimum(i0 + 1, in_size - 1)
    frac = src - i0.astype(jnp.float32)
    m = (jax.nn.one_hot(i0, in_size, dtype=jnp.float32) * (1.0 - frac)[:, None]
         + jax.nn.one_hot(i1, in_size, dtype=jnp.float32) * frac[:, None])
    return m  # (out_size, in_size)


@jax.jit
def mask_branch_forward(x, gamma, beta, conv_w, conv_b):
    """x: (N, C, H, W) float32 -> (N, C, 19, 19) float32."""
    N, C, H, W = x.shape
    OH = OW = 19
    HW = H * W

    x3 = x.reshape(N, C, HW)                                      # free reshape (NCHW)
    w = conv_w[:, :, 0, 0]                                        # (out, in)
    params = jnp.concatenate(
        [w, gamma.reshape(C, 1), beta.reshape(C, 1), conv_b.reshape(C, 1)],
        axis=1)                                                   # (C, C+3), one operand

    mh = bilinear_matrix(H, OH)                                   # (19, H)
    mw = bilinear_matrix(W, OW)                                   # (19, W)
    # K[h*W + w, oh*OW + ow] = mh[oh, h] * mw[ow, w]  (== kron(Mh, Mw)^T), shipped as bf16.
    kmat = jnp.einsum('oh,pw->hwop', mh, mw).reshape(HW, OH * OW).astype(jnp.bfloat16)

    kernel = functools.partial(_fused_kernel, n_batch=N, hw=HW)
    out2 = pl.pallas_call(
        kernel,
        out_shape=jax.ShapeDtypeStruct((N * C, OH * OW), jnp.float32),
        in_specs=[
            pl.BlockSpec((N, C, HW), lambda: (0, 0, 0)),
            pl.BlockSpec((C, C + 3), lambda: (0, 0)),
            pl.BlockSpec(memory_space=pl.ANY),                    # kmat stays in HBM; manual DMA
        ],
        out_specs=pl.BlockSpec((N * C, OH * OW), lambda: (0, 0)),
        scratch_shapes=[
            pltpu.VMEM((HW, OH * OW), jnp.bfloat16),              # kmat landing buffer (~185 KiB)
            pltpu.SemaphoreType.DMA(()),
        ],
        # Actual VMEM need is well under 1 MiB; keep an explicit, right-sized budget so the
        # same kernel leaves headroom on v7x's 64 MiB VMEM at bigger tilings.
        compiler_params=pltpu.CompilerParams(vmem_limit_bytes=8 * 1024 * 1024),
    )(x3, params, kmat)
    return out2.reshape(N, C, OH, OW)                             # free reshape


# ---------------------------------------------------------------------------
# Pure-JAX reference (sanity check, full f32)
# ---------------------------------------------------------------------------
def ref_forward(x, gamma, beta, conv_w, conv_b):
    g = gamma.reshape(1, -1, 1, 1)
    be = beta.reshape(1, -1, 1, 1)
    bb = conv_b.reshape(1, -1, 1, 1)
    w = conv_w[:, :, 0, 0]

    def bn(v):
        mean = v.mean(axis=(0, 2, 3), keepdims=True)
        var = ((v - mean) ** 2).mean(axis=(0, 2, 3), keepdims=True)
        return (v - mean) / jnp.sqrt(var + EPS) * g + be

    def conv(v):
        return jnp.einsum('oc,nchw->nohw', w, v) + bb

    y = x
    v = conv(jnp.maximum(bn(x), 0.0))
    v = conv(jnp.maximum(bn(v), 0.0))
    v = conv(jnp.maximum(bn(v), 0.0))
    v = v + y
    mh = bilinear_matrix(x.shape[2], 19)
    mw = bilinear_matrix(x.shape[3], 19)
    return jnp.einsum('oh,nchw,pw->ncop', mh, v, mw)


if __name__ == "__main__":
    N, C, H, W = 2, 4, 16, 16
    key = jax.random.PRNGKey(0)
    kx, kg, kb, kw, kc = jax.random.split(key, 5)

    x = jax.random.normal(kx, (N, C, H, W), dtype=jnp.float32)
    gamma = 1.0 + 0.1 * jax.random.normal(kg, (C,), dtype=jnp.float32)   # BN weight
    beta = 0.1 * jax.random.normal(kb, (C,), dtype=jnp.float32)          # BN bias
    conv_w = jax.random.normal(kw, (C, C, 1, 1), dtype=jnp.float32) * 0.2
    conv_b = 0.1 * jax.random.normal(kc, (C,), dtype=jnp.float32)

    out = jax.block_until_ready(mask_branch_forward(x, gamma, beta, conv_w, conv_b))
    assert out.shape == (N, C, 19, 19), out.shape

    ref = jax.block_until_ready(ref_forward(x, gamma, beta, conv_w, conv_b))
    # Tolerance relaxed vs the pure-f32 version: the resize weights/operand run through the
    # bf16 MXU path (~2^-9 relative quantization, f32 accumulation), per the perf review.
    assert jnp.allclose(out, ref, rtol=2e-2, atol=2e-2), "mismatch vs reference"

    print("KERNEL_OK")
</pallas_src>

<mosaic_0001>
module attributes {stable_mosaic.version = 11 : i64} {
  func.func @_fused_kernel(%arg0: memref<2x4x256xf32, #tpu.memory_space<vmem>>, %arg1: memref<4x7xf32, #tpu.memory_space<vmem>>, %arg2: memref<256x361xbf16, #tpu.memory_space<any>>, %arg3: memref<8x361xf32, #tpu.memory_space<vmem>>, %arg4: memref<256x361xbf16, #tpu.memory_space<vmem>>, %arg5: memref<!tpu.dma_semaphore, #tpu.memory_space<semaphore_mem>>) attributes {dimension_semantics = [], scalar_prefetch = 0 : i64, scratch_operands = 2 : i64, tpu.core_type = #tpu.core_type<tc>} {
    tpu.enqueue_dma source(%arg2 : memref<256x361xbf16, #tpu.memory_space<any>>) target(%arg4 : memref<256x361xbf16, #tpu.memory_space<vmem>>) target_semaphore(%arg5 : memref<!tpu.dma_semaphore, #tpu.memory_space<semaphore_mem>>)
    %c0 = arith.constant 0 : index
    %c0_0 = arith.constant 0 : index
    %0 = vector.load %arg1[%c0, %c0_0] : memref<4x7xf32, #tpu.memory_space<vmem>>, vector<4x7xf32>
    %1 = vector.extract_strided_slice %0 {offsets = [0, 0], sizes = [4, 4], strides = [1, 1]} : vector<4x7xf32> to vector<4x4xf32>
    %2 = vector.extract_strided_slice %0 {offsets = [0, 4], sizes = [4, 1], strides = [1, 1]} : vector<4x7xf32> to vector<4x1xf32>
    %3 = vector.extract_strided_slice %0 {offsets = [0, 5], sizes = [4, 1], strides = [1, 1]} : vector<4x7xf32> to vector<4x1xf32>
    %4 = vector.extract_strided_slice %0 {offsets = [0, 6], sizes = [4, 1], strides = [1, 1]} : vector<4x7xf32> to vector<4x1xf32>
    %5 = vector.extract_strided_slice %1 {offsets = [0, 0], sizes = [4, 1], strides = [1, 1]} : vector<4x4xf32> to vector<4x1xf32>
    %6 = vector.extract_strided_slice %1 {offsets = [0, 1], sizes = [4, 1], strides = [1, 1]} : vector<4x4xf32> to vector<4x1xf32>
    %7 = vector.extract_strided_slice %1 {offsets = [0, 2], sizes = [4, 1], strides = [1, 1]} : vector<4x4xf32> to vector<4x1xf32>
    %8 = vector.extract_strided_slice %1 {offsets = [0, 3], sizes = [4, 1], strides = [1, 1]} : vector<4x4xf32> to vector<4x1xf32>
    %c0_1 = arith.constant 0 : index
    %c0_2 = arith.constant 0 : index
    %c0_3 = arith.constant 0 : index
    %9 = vector.load %arg0[%c0_1, %c0_2, %c0_3] : memref<2x4x256xf32, #tpu.memory_space<vmem>>, vector<1x4x256xf32>
    %10 = vector.shape_cast %9 : vector<1x4x256xf32> to vector<4x256xf32>
    %c1 = arith.constant 1 : index
    %c0_4 = arith.constant 0 : index
    %c0_5 = arith.constant 0 : index
    %11 = vector.load %arg0[%c1, %c0_4, %c0_5] : memref<2x4x256xf32, #tpu.memory_space<vmem>>, vector<1x4x256xf32>
    %12 = vector.shape_cast %11 : vector<1x4x256xf32> to vector<4x256xf32>
    %13 = tpu.concatenate %10, %12 in 1 : vector<4x256xf32>, vector<4x256xf32> -> vector<4x512xf32>
    %cst = arith.constant dense<0.000000e+00> : vector<4xf32>
    %14 = vector.multi_reduction <add>, %13, %cst [1] : vector<4x512xf32> to vector<4xf32>
    %15 = vector.shape_cast %14 : vector<4xf32> to vector<4x1xf32>
    %16 = arith.mulf %13, %13 : vector<4x512xf32>
    %cst_6 = arith.constant dense<0.000000e+00> : vector<4xf32>
    %17 = vector.multi_reduction <add>, %16, %cst_6 [1] : vector<4x512xf32> to vector<4xf32>
    %18 = vector.shape_cast %17 : vector<4xf32> to vector<4x1xf32>
    %cst_7 = arith.constant 0.001953125 : f32
    %19 = vector.broadcast %cst_7 : f32 to vector<4x1xf32>
    %20 = arith.mulf %15, %19 : vector<4x1xf32>
    %cst_8 = arith.constant 0.001953125 : f32
    %21 = vector.broadcast %cst_8 : f32 to vector<4x1xf32>
    %22 = arith.mulf %18, %21 : vector<4x1xf32>
    %23 = arith.mulf %20, %20 : vector<4x1xf32>
    %24 = arith.subf %22, %23 : vector<4x1xf32>
    %cst_9 = arith.constant 9.99999974E-6 : f32
    %25 = vector.broadcast %cst_9 : f32 to vector<4x1xf32>
    %26 = arith.addf %24, %25 : vector<4x1xf32>
    %27 = math.rsqrt %26 : vector<4x1xf32>
    %28 = arith.mulf %2, %27 : vector<4x1xf32>
    %29 = arith.mulf %20, %28 : vector<4x1xf32>
    %30 = arith.subf %3, %29 : vector<4x1xf32>
    %31 = vector.broadcast %28 : vector<4x1xf32> to vector<4x512xf32>
    %32 = arith.mulf %13, %31 : vector<4x512xf32>
    %33 = vector.broadcast %30 : vector<4x1xf32> to vector<4x512xf32>
    %34 = arith.addf %32, %33 : vector<4x512xf32>
    %cst_10 = arith.constant 0.000000e+00 : f32
    %35 = vector.broadcast %cst_10 : f32 to vector<4x512xf32>
    %36 = arith.maximumf %34, %35 : vector<4x512xf32>
    %37 = vector.extract_strided_slice %36 {offsets = [0, 0], sizes = [1, 512], strides = [1, 1]} : vector<4x512xf32> to vector<1x512xf32>
    %38 = vector.broadcast %5 : vector<4x1xf32> to vector<4x512xf32>
    %39 = vector.broadcast %37 : vector<1x512xf32> to vector<4x512xf32>
    %40 = arith.mulf %38, %39 : vector<4x512xf32>
    %41 = vector.broadcast %4 : vector<4x1xf32> to vector<4x512xf32>
    %42 = arith.addf %41, %40 : vector<4x512xf32>
    %43 = vector.extract_strided_slice %36 {offsets = [1, 0], sizes = [1, 512], strides = [1, 1]} : vector<4x512xf32> to vector<1x512xf32>
    %44 = vector.broadcast %6 : vector<4x1xf32> to vector<4x512xf32>
    %45 = vector.broadcast %43 : vector<1x512xf32> to vector<4x512xf32>
    %46 = arith.mulf %44, %45 : vector<4x512xf32>
    %47 = arith.addf %42, %46 : vector<4x512xf32>
    %48 = vector.extract_strided_slice %36 {offsets = [2, 0], sizes = [1, 512], strides = [1, 1]} : vector<4x512xf32> to vector<1x512xf32>
    %49 = vector.broadcast %7 : vector<4x1xf32> to vector<4x512xf32>
    %50 = vector.broadcast %48 : vector<1x512xf32> to vector<4x512xf32>
    %51 = arith.mulf %49, %50 : vector<4x512xf32>
    %52 = arith.addf %47, %51 : vector<4x512xf32>
    %53 = vector.extract_strided_slice %36 {offsets = [3, 0], sizes = [1, 512], strides = [1, 1]} : vector<4x512xf32> to vector<1x512xf32>
    %54 = vector.broadcast %8 : vector<4x1xf32> to vector<4x512xf32>
    %55 = vector.broadcast %53 : vector<1x512xf32> to vector<4x512xf32>
    %56 = arith.mulf %54, %55 : vector<4x512xf32>
    %57 = arith.addf %52, %56 : vector<4x512xf32>
    %cst_11 = arith.constant dense<0.000000e+00> : vector<4xf32>
    %58 = vector.multi_reduction <add>, %57, %cst_11 [1] : vector<4x512xf32> to vector<4xf32>
    %59 = vector.shape_cast %58 : vector<4xf32> to vector<4x1xf32>
    %60 = arith.mulf %57, %57 : vector<4x512xf32>
    %cst_12 = arith.constant dense<0.000000e+00> : vector<4xf32>
    %61 = vector.multi_reduction <add>, %60, %cst_12 [1] : vector<4x512xf32> to vector<4xf32>
    %62 = vector.shape_cast %61 : vector<4xf32> to vector<4x1xf32>
    %cst_13 = arith.constant 0.001953125 : f32
    %63 = vector.broadcast %cst_13 : f32 to vector<4x1xf32>
    %64 = arith.mulf %59, %63 : vector<4x1xf32>
    %cst_14 = arith.constant 0.001953125 : f32
    %65 = vector.broadcast %cst_14 : f32 to vector<4x1xf32>
    %66 = arith.mulf %62, %65 : vector<4x1xf32>
    %67 = arith.mulf %64, %64 : vector<4x1xf32>
    %68 = arith.subf %66, %67 : vector<4x1xf32>
    %cst_15 = arith.constant 9.99999974E-6 : f32
    %69 = vector.broadcast %cst_15 : f32 to vector<4x1xf32>
    %70 = arith.addf %68, %69 : vector<4x1xf32>
    %71 = math.rsqrt %70 : vector<4x1xf32>
    %72 = arith.mulf %2, %71 : vector<4x1xf32>
    %73 = arith.mulf %64, %72 : vector<4x1xf32>
    %74 = arith.subf %3, %73 : vector<4x1xf32>
    %75 = vector.broadcast %72 : vector<4x1xf32> to vector<4x512xf32>
    %76 = arith.mulf %57, %75 : vector<4x512xf32>
    %77 = vector.broadcast %74 : vector<4x1xf32> to vector<4x512xf32>
    %78 = arith.addf %76, %77 : vector<4x512xf32>
    %cst_16 = arith.constant 0.000000e+00 : f32
    %79 = vector.broadcast %cst_16 : f32 to vector<4x512xf32>
    %80 = arith.maximumf %78, %79 : vector<4x512xf32>
    %81 = vector.extract_strided_slice %80 {offsets = [0, 0], sizes = [1, 512], strides = [1, 1]} : vector<4x512xf32> to vector<1x512xf32>
    %82 = vector.broadcast %5 : vector<4x1xf32> to vector<4x512xf32>
    %83 = vector.broadcast %81 : vector<1x512xf32> to vector<4x512xf32>
    %84 = arith.mulf %82, %83 : vector<4x512xf32>
    %85 = vector.broadcast %4 : vector<4x1xf32> to vector<4x512xf32>
    %86 = arith.addf %85, %84 : vector<4x512xf32>
    %87 = vector.extract_strided_slice %80 {offsets = [1, 0], sizes = [1, 512], strides = [1, 1]} : vector<4x512xf32> to vector<1x512xf32>
    %88 = vector.broadcast %6 : vector<4x1xf32> to vector<4x512xf32>
    %89 = vector.broadcast %87 : vector<1x512xf32> to vector<4x512xf32>
    %90 = arith.mulf %88, %89 : vector<4x512xf32>
    %91 = arith.addf %86, %90 : vector<4x512xf32>
    %92 = vector.extract_strided_slice %80 {offsets = [2, 0], sizes = [1, 512], strides = [1, 1]} : vector<4x512xf32> to vector<1x512xf32>
    %93 = vector.broadcast %7 : vector<4x1xf32> to vector<4x512xf32>
    %94 = vector.broadcast %92 : vector<1x512xf32> to vector<4x512xf32>
    %95 = arith.mulf %93, %94 : vector<4x512xf32>
    %96 = arith.addf %91, %95 : vector<4x512xf32>
    %97 = vector.extract_strided_slice %80 {offsets = [3, 0], sizes = [1, 512], strides = [1, 1]} : vector<4x512xf32> to vector<1x512xf32>
    %98 = vector.broadcast %8 : vector<4x1xf32> to vector<4x512xf32>
    %99 = vector.broadcast %97 : vector<1x512xf32> to vector<4x512xf32>
    %100 = arith.mulf %98, %99 : vector<4x512xf32>
    %101 = arith.addf %96, %100 : vector<4x512xf32>
    %cst_17 = arith.constant dense<0.000000e+00> : vector<4xf32>
    %102 = vector.multi_reduction <add>, %101, %cst_17 [1] : vector<4x512xf32> to vector<4xf32>
    %103 = vector.shape_cast %102 : vector<4xf32> to vector<4x1xf32>
    %104 = arith.mulf %101, %101 : vector<4x512xf32>
    %cst_18 = arith.constant dense<0.000000e+00> : vector<4xf32>
    %105 = vector.multi_reduction <add>, %104, %cst_18 [1] : vector<4x512xf32> to vector<4xf32>
    %106 = vector.shape_cast %105 : vector<4xf32> to vector<4x1xf32>
    %cst_19 = arith.constant 0.001953125 : f32
    %107 = vector.broadcast %cst_19 : f32 to vector<4x1xf32>
    %108 = arith.mulf %103, %107 : vector<4x1xf32>
    %cst_20 = arith.constant 0.001953125 : f32
    %109 = vector.broadcast %cst_20 : f32 to vector<4x1xf32>
    %110 = arith.mulf %106, %109 : vector<4x1xf32>
    %111 = arith.mulf %108, %108 : vector<4x1xf32>
    %112 = arith.subf %110, %111 : vector<4x1xf32>
    %cst_21 = arith.constant 9.99999974E-6 : f32
    %113 = vector.broadcast %cst_21 : f32 to vector<4x1xf32>
    %114 = arith.addf %112, %113 : vector<4x1xf32>
    %115 = math.rsqrt %114 : vector<4x1xf32>
    %116 = arith.mulf %2, %115 : vector<4x1xf32>
    %117 = arith.mulf %108, %116 : vector<4x1xf32>
    %118 = arith.subf %3, %117 : vector<4x1xf32>
    %119 = vector.broadcast %116 : vector<4x1xf32> to vector<4x512xf32>
    %120 = arith.mulf %101, %119 : vector<4x512xf32>
    %121 = vector.broadcast %118 : vector<4x1xf32> to vector<4x512xf32>
    %122 = arith.addf %120, %121 : vector<4x512xf32>
    %cst_22 = arith.constant 0.000000e+00 : f32
    %123 = vector.broadcast %cst_22 : f32 to vector<4x512xf32>
    %124 = arith.maximumf %122, %123 : vector<4x512xf32>
    %125 = vector.extract_strided_slice %124 {offsets = [0, 0], sizes = [1, 512], strides = [1, 1]} : vector<4x512xf32> to vector<1x512xf32>
    %126 = vector.broadcast %5 : vector<4x1xf32> to vector<4x512xf32>
    %127 = vector.broadcast %125 : vector<1x512xf32> to vector<4x512xf32>
    %128 = arith.mulf %126, %127 : vector<4x512xf32>
    %129 = vector.broadcast %4 : vector<4x1xf32> to vector<4x512xf32>
    %130 = arith.addf %129, %128 : vector<4x512xf32>
    %131 = vector.extract_strided_slice %124 {offsets = [1, 0], sizes = [1, 512], strides = [1, 1]} : vector<4x512xf32> to vector<1x512xf32>
    %132 = vector.broadcast %6 : vector<4x1xf32> to vector<4x512xf32>
    %133 = vector.broadcast %131 : vector<1x512xf32> to vector<4x512xf32>
    %134 = arith.mulf %132, %133 : vector<4x512xf32>
    %135 = arith.addf %130, %134 : vector<4x512xf32>
    %136 = vector.extract_strided_slice %124 {offsets = [2, 0], sizes = [1, 512], strides = [1, 1]} : vector<4x512xf32> to vector<1x512xf32>
    %137 = vector.broadcast %7 : vector<4x1xf32> to vector<4x512xf32>
    %138 = vector.broadcast %136 : vector<1x512xf32> to vector<4x512xf32>
    %139 = arith.mulf %137, %138 : vector<4x512xf32>
    %140 = arith.addf %135, %139 : vector<4x512xf32>
    %141 = vector.extract_strided_slice %124 {offsets = [3, 0], sizes = [1, 512], strides = [1, 1]} : vector<4x512xf32> to vector<1x512xf32>
    %142 = vector.broadcast %8 : vector<4x1xf32> to vector<4x512xf32>
    %143 = vector.broadcast %141 : vector<1x512xf32> to vector<4x512xf32>
    %144 = arith.mulf %142, %143 : vector<4x512xf32>
    %145 = arith.addf %140, %144 : vector<4x512xf32>
    %146 = arith.addf %145, %13 : vector<4x512xf32>
    %147 = vector.extract_strided_slice %146 {offsets = [0, 0], sizes = [4, 256], strides = [1, 1]} : vector<4x512xf32> to vector<4x256xf32>
    %148 = vector.extract_strided_slice %146 {offsets = [0, 256], sizes = [4, 256], strides = [1, 1]} : vector<4x512xf32> to vector<4x256xf32>
    %149 = tpu.concatenate %147, %148 in 0 : vector<4x256xf32>, vector<4x256xf32> -> vector<8x256xf32>
    tpu.wait_dma2 semaphore(%arg5 : memref<!tpu.dma_semaphore, #tpu.memory_space<semaphore_mem>>) src(%arg2 : memref<256x361xbf16, #tpu.memory_space<any>>) dst(%arg4 : memref<256x361xbf16, #tpu.memory_space<vmem>>)
    %150 = arith.truncf %149 : vector<8x256xf32> to vector<8x256xbf16>
    %c0_23 = arith.constant 0 : index
    %c0_24 = arith.constant 0 : index
    %151 = vector.load %arg4[%c0_23, %c0_24] : memref<256x361xbf16, #tpu.memory_space<vmem>>, vector<256x361xbf16>
    %cst_25 = arith.constant dense<0.000000e+00> : vector<8x361xf32>
    %152 = tpu.matmul %150, %151, %cst_25 {dimension_numbers = #tpu.dot_dimension_numbers<[1], [0], [0], [1], [0, 0, 1, 1], [], []>} : vector<8x256xbf16>, vector<256x361xbf16>, vector<8x361xf32> -> vector<8x361xf32>
    %c0_26 = arith.constant 0 : index
    %c0_27 = arith.constant 0 : index
    %153 = vector.load %arg3[%c0_26, %c0_27] : memref<8x361xf32, #tpu.memory_space<vmem>>, vector<8x361xf32>
    tpu.vector_store %arg3[%c0_26, %c0_27], %152 {strides = array<i32>} : memref<8x361xf32, #tpu.memory_space<vmem>>, vector<8x361xf32>,
    return
  }
}

</mosaic_0001>

<llo_original>
// kernel: mask_branch_forward.1
$region0: #{mask_branch_forward.1}
  #allocation0 [shape = 'u32[]', space=smem, size = 0x4, offset = 0x4, fixed_abs, tag = 'smem constant byte address 0x4 - core index']
  #allocation1 [shape = 'u32[144,128]{1,0:T(1,128)}', space=vmem, size = 0x12000, scoped, tag = 'internal scratch']
  #allocation2 [shape = 'bf16[256,361]{1,0:T(16,128)(2,1)}', space=vmem, size = 0x30000, scoped, tag = 'scratch operand']
  #allocation3 [shape = 's32[1]{0}', space=sflag, size = 0x4, scoped, tag = 'scratch operand']
  #allocation4 [shape = 's32[]', space=sflag, size = 0x4, offset = 0, fixed_abs, tag = 'sflag constant byte address 0x0 - dummy sync flag']
  %s0 = inlined_call_operand.vmem [shape: f32[2,4,256], index: 0, kind: input, shape index: {}]
  %s1 = inlined_call_operand.vmem [shape: f32[4,7], index: 1, kind: input, shape index: {}]
  %s2 = inlined_call_operand.vmem [shape: bf16[256,361], index: 2, kind: input, shape index: {}]
  %s3 = inlined_call_operand.vmem [shape: f32[8,361], index: 3, kind: output, shape index: {}]
  %s4 = sld [smem:[#allocation0]]
  $region55: #{mask_branch_forward.1} parent=0
    _
  %s6 = ssub.s32 1, %s4
  %s7 = scalar_select 0, %s6, %s4
  // Predicated region
  $region2: #{mask_branch_forward.1} parent=0 // pred_check
    _
  $region3: #{mask_branch_forward.1} parent=0 // pred_check_branch
    %9 = sbr.rel (0) target = $region5
  $region4: #{mask_branch_forward.1} parent=0 // pred_region
    _
  $region5: #{mask_branch_forward.1} parent=0 // pred_fallthru
    _
  // Predicated region
  $region6: #{mask_branch_forward.1} parent=0 // pred_check
    _
  $region7: #{mask_branch_forward.1} parent=0 // pred_check_branch
    %11 = sbr.rel (0) target = $region9
  $region8: #{mask_branch_forward.1} parent=0 // pred_region
    _
  $region9: #{mask_branch_forward.1} parent=0 // pred_fallthru
    _
  %p14 = scmp.lt.u32.totalorder 4, 8
  %p15 = pneg %p14
  // Predicated region
  $region10: #{mask_branch_forward.1} parent=0 // pred_check
    _
  $region11: #{mask_branch_forward.1} parent=0 // pred_check_branch
    %17 = sbr.rel (%p14) target = $region13
  $region12: #{mask_branch_forward.1} parent=0 // pred_region
    %s222 = sand.u32 4, 7
    %p223 = scmp.eq.s32.totalorder %s222, 0
    %p224 = pneg %p223
    // Predicated region
    $region25: #{mask_branch_forward.1} parent=12 // pred_check
      _
    $region26: #{mask_branch_forward.1} parent=12 // pred_check_branch
      %226 = sbr.rel (%p223) target = $region28
    $region27: #{mask_branch_forward.1} parent=12 // pred_region
      %s227 = sand.u32 4, 7
      %s228 = ssub.s32 4, %s227
      %s229 = scalar_lea.vmem %s2, %s228
      %s230 = ssub.s32 4, %s227
      %s231 = scalar_lea.vmem [#allocation2], %s230
      loop: start=0, step=1, limit=1
      $region29: #{mask_branch_forward.1} parent=27 // loop_pre_header
        _
      $region30: #{mask_branch_forward.1} parent=27 // loop_header
        %s233 = sphi 0, %s237
        %p234 = scmp.ge.s32.totalorder %s233, 1
        %s238 = sphi %s2, %s2
        %s239 = sphi [#allocation2], [#allocation2]
      $region31: #{mask_branch_forward.1} parent=27 // loop_header_branch
        %236 = sbr.rel (%p234) target = $region35
      $region32: #{mask_branch_forward.1} parent=27 // loop_body
        _
      $region33: #{mask_branch_forward.1} parent=27 // loop_footer
        %s237 = sadd.s32 1, %s233
      $region34: #{mask_branch_forward.1} parent=27 // loop_footer_branch
        %232 = sbr.rel target = $region30
      $region35: #{mask_branch_forward.1} parent=27 // loop_exit
        _
      %s240 = sshllo.u32 0, %s227
      loop: start=0, step=1, limit=1
      $region36: #{mask_branch_forward.1} parent=27 // loop_pre_header
        _
      $region37: #{mask_branch_forward.1} parent=27 // loop_header
        %s242 = sphi 0, %s246
        %p243 = scmp.ge.s32.totalorder %s242, 1
        %s247 = sphi %s229, %s229
        %s248 = sphi %s231, %s231
      $region38: #{mask_branch_forward.1} parent=27 // loop_header_branch
        %245 = sbr.rel (%p243) target = $region42
      $region39: #{mask_branch_forward.1} parent=27 // loop_body
        %v249 = vld [vmem:[%s247] sm:%s240]
        %250 = vst [vmem:[%s248] sm:%s240] %v249
        %v251 = vld [vmem:[%s247 + $0xc] sm:%s240]
        %252 = vst [vmem:[%s248 + $0x4] sm:%s240] %v251
        %v253 = vld [vmem:[%s247 + $0x4] sm:%s240]
        %254 = vst [vmem:[%s248 + $0x8] sm:%s240] %v253
        %v255 = vld [vmem:[%s247 + $0x10] sm:%s240]
        %256 = vst [vmem:[%s248 + $0xc] sm:%s240] %v255
        %v257 = vld [vmem:[%s247 + $0x8] sm:%s240]
        %258 = vst [vmem:[%s248 + $0x10] sm:%s240] %v257
        %v259 = vld [vmem:[%s247 + $0x14] sm:%s240]
        %260 = vst [vmem:[%s248 + $0x14] sm:%s240] %v259
        %v261 = vld [vmem:[%s247 + $0x18] sm:%s240]
        %262 = vst [vmem:[%s248 + $0x18] sm:%s240] %v261
        %v263 = vld [vmem:[%s247 + $0x24] sm:%s240]
        %264 = vst [vmem:[%s248 + $0x1c] sm:%s240] %v263
        %v265 = vld [vmem:[%s247 + $0x1c] sm:%s240]
        %266 = vst [vmem:[%s248 + $0x20] sm:%s240] %v265
        %v267 = vld [vmem:[%s247 + $0x28] sm:%s240]
        %268 = vst [vmem:[%s248 + $0x24] sm:%s240] %v267
        %v269 = vld [vmem:[%s247 + $0x20] sm:%s240]
        %270 = vst [vmem:[%s248 + $0x28] sm:%s240] %v269
        %v271 = vld [vmem:[%s247 + $0x2c] sm:%s240]
        %272 = vst [vmem:[%s248 + $0x2c] sm:%s240] %v271
        %v273 = vld [vmem:[%s247 + $0x30] sm:%s240]
        %274 = vst [vmem:[%s248 + $0x30] sm:%s240] %v273
        %v275 = vld [vmem:[%s247 + $0x3c] sm:%s240]
        %276 = vst [vmem:[%s248 + $0x34] sm:%s240] %v275
        %v277 = vld [vmem:[%s247 + $0x34] sm:%s240]
        %278 = vst [vmem:[%s248 + $0x38] sm:%s240] %v277
        %v279 = vld [vmem:[%s247 + $0x40] sm:%s240]
        %280 = vst [vmem:[%s248 + $0x3c] sm:%s240] %v279
        %v281 = vld [vmem:[%s247 + $0x38] sm:%s240]
        %282 = vst [vmem:[%s248 + $0x40] sm:%s240] %v281
        %v283 = vld [vmem:[%s247 + $0x44] sm:%s240]
        %284 = vst [vmem:[%s248 + $0x44] sm:%s240] %v283
        %v285 = vld [vmem:[%s247 + $0x48] sm:%s240]
        %286 = vst [vmem:[%s248 + $0x48] sm:%s240] %v285
        %v287 = vld [vmem:[%s247 + $0x54] sm:%s240]
        %288 = vst [vmem:[%s248 + $0x4c] sm:%s240] %v287
        %v289 = vld [vmem:[%s247 + $0x4c] sm:%s240]
        %290 = vst [vmem:[%s248 + $0x50] sm:%s240] %v289
        %v291 = vld [vmem:[%s247 + $0x58] sm:%s240]
        %292 = vst [vmem:[%s248 + $0x54] sm:%s240] %v291
        %v293 = vld [vmem:[%s247 + $0x50] sm:%s240]
        %294 = vst [vmem:[%s248 + $0x58] sm:%s240] %v293
        %v295 = vld [vmem:[%s247 + $0x5c] sm:%s240]
        %296 = vst [vmem:[%s248 + $0x5c] sm:%s240] %v295
        %v297 = vld [vmem:[%s247 + $0x60] sm:%s240]
        %298 = vst [vmem:[%s248 + $0x60] sm:%s240] %v297
        %v299 = vld [vmem:[%s247 + $0x6c] sm:%s240]
        %300 = vst [vmem:[%s248 + $0x64] sm:%s240] %v299
        %v301 = vld [vmem:[%s247 + $0x64] sm:%s240]
        %302 = vst [vmem:[%s248 + $0x68] sm:%s240] %v301
        %v303 = vld [vmem:[%s247 + $0x70] sm:%s240]
        %304 = vst [vmem:[%s248 + $0x6c] sm:%s240] %v303
        %v305 = vld [vmem:[%s247 + $0x68] sm:%s240]
        %306 = vst [vmem:[%s248 + $0x70] sm:%s240] %v305
        %v307 = vld [vmem:[%s247 + $0x74] sm:%s240]
        %308 = vst [vmem:[%s248 + $0x74] sm:%s240] %v307
        %v309 = vld [vmem:[%s247 + $0x78] sm:%s240]
        %310 = vst [vmem:[%s248 + $0x78] sm:%s240] %v309
        %v311 = vld [vmem:[%s247 + $0x84] sm:%s240]
        %312 = vst [vmem:[%s248 + $0x7c] sm:%s240] %v311
        %v313 = vld [vmem:[%s247 + $0x7c] sm:%s240]
        %314 = vst [vmem:[%s248 + $0x80] sm:%s240] %v313
        %v315 = vld [vmem:[%s247 + $0x88] sm:%s240]
        %316 = vst [vmem:[%s248 + $0x84] sm:%s240] %v315
        %v317 = vld [vmem:[%s247 + $0x80] sm:%s240]
        %318 = vst [vmem:[%s248 + $0x88] sm:%s240] %v317
        %v319 = vld [vmem:[%s247 + $0x8c] sm:%s240]
        %320 = vst [vmem:[%s248 + $0x8c] sm:%s240] %v319
        %v321 = vld [vmem:[%s247 + $0x90] sm:%s240]
        %322 = vst [vmem:[%s248 + $0x90] sm:%s240] %v321
        %v323 = vld [vmem:[%s247 + $0x9c] sm:%s240]
        %324 = vst [vmem:[%s248 + $0x94] sm:%s240] %v323
        %v325 = vld [vmem:[%s247 + $0x94] sm:%s240]
        %326 = vst [vmem:[%s248 + $0x98] sm:%s240] %v325
        %v327 = vld [vmem:[%s247 + $0xa0] sm:%s240]
        %328 = vst [vmem:[%s248 + $0x9c] sm:%s240] %v327
        %v329 = vld [vmem:[%s247 + $0x98] sm:%s240]
        %330 = vst [vmem:[%s248 + $0xa0] sm:%s240] %v329
        %v331 = vld [vmem:[%s247 + $0xa4] sm:%s240]
        %332 = vst [vmem:[%s248 + $0xa4] sm:%s240] %v331
        %v333 = vld [vmem:[%s247 + $0xa8] sm:%s240]
        %334 = vst [vmem:[%s248 + $0xa8] sm:%s240] %v333
        %v335 = vld [vmem:[%s247 + $0xb4] sm:%s240]
        %336 = vst [vmem:[%s248 + $0xac] sm:%s240] %v335
        %v337 = vld [vmem:[%s247 + $0xac] sm:%s240]
        %338 = vst [vmem:[%s248 + $0xb0] sm:%s240] %v337
        %v339 = vld [vmem:[%s247 + $0xb8] sm:%s240]
        %340 = vst [vmem:[%s248 + $0xb4] sm:%s240] %v339
        %v341 = vld [vmem:[%s247 + $0xb0] sm:%s240]
        %342 = vst [vmem:[%s248 + $0xb8] sm:%s240] %v341
        %v343 = vld [vmem:[%s247 + $0xbc] sm:%s240]
        %344 = vst [vmem:[%s248 + $0xbc] sm:%s240] %v343
        %v345 = vld [vmem:[%s247 + $0xc0] sm:%s240]
        %346 = vst [vmem:[%s248 + $0xc0] sm:%s240] %v345
        %v347 = vld [vmem:[%s247 + $0xcc] sm:%s240]
        %348 = vst [vmem:[%s248 + $0xc4] sm:%s240] %v347
        %v349 = vld [vmem:[%s247 + $0xc4] sm:%s240]
        %350 = vst [vmem:[%s248 + $0xc8] sm:%s240] %v349
        %v351 = vld [vmem:[%s247 + $0xd0] sm:%s240]
        %352 = vst [vmem:[%s248 + $0xcc] sm:%s240] %v351
        %v353 = vld [vmem:[%s247 + $0xc8] sm:%s240]
        %354 = vst [vmem:[%s248 + $0xd0] sm:%s240] %v353
        %v355 = vld [vmem:[%s247 + $0xd4] sm:%s240]
        %356 = vst [vmem:[%s248 + $0xd4] sm:%s240] %v355
        %v357 = vld [vmem:[%s247 + $0xd8] sm:%s240]
        %358 = vst [vmem:[%s248 + $0xd8] sm:%s240] %v357
        %v359 = vld [vmem:[%s247 + $0xe4] sm:%s240]
        %360 = vst [vmem:[%s248 + $0xdc] sm:%s240] %v359
        %v361 = vld [vmem:[%s247 + $0xdc] sm:%s240]
        %362 = vst [vmem:[%s248 + $0xe0] sm:%s240] %v361
        %v363 = vld [vmem:[%s247 + $0xe8] sm:%s240]
        %364 = vst [vmem:[%s248 + $0xe4] sm:%s240] %v363
        %v365 = vld [vmem:[%s247 + $0xe0] sm:%s240]
        %366 = vst [vmem:[%s248 + $0xe8] sm:%s240] %v365
        %v367 = vld [vmem:[%s247 + $0xec] sm:%s240]
        %368 = vst [vmem:[%s248 + $0xec] sm:%s240] %v367
        %v369 = vld [vmem:[%s247 + $0xf0] sm:%s240]
        %370 = vst [vmem:[%s248 + $0xf0] sm:%s240] %v369
        %v371 = vld [vmem:[%s247 + $0xfc] sm:%s240]
        %372 = vst [vmem:[%s248 + $0xf4] sm:%s240] %v371
        %v373 = vld [vmem:[%s247 + $0xf4] sm:%s240]
        %374 = vst [vmem:[%s248 + $0xf8] sm:%s240] %v373
        %v375 = vld [vmem:[%s247 + $0x100] sm:%s240]
        %376 = vst [vmem:[%s248 + $0xfc] sm:%s240] %v375
        %v377 = vld [vmem:[%s247 + $0xf8] sm:%s240]
        %378 = vst [vmem:[%s248 + $0x100] sm:%s240] %v377
        %v379 = vld [vmem:[%s247 + $0x104] sm:%s240]
        %380 = vst [vmem:[%s248 + $0x104] sm:%s240] %v379
        %v381 = vld [vmem:[%s247 + $0x108] sm:%s240]
        %382 = vst [vmem:[%s248 + $0x108] sm:%s240] %v381
        %v383 = vld [vmem:[%s247 + $0x114] sm:%s240]
        %384 = vst [vmem:[%s248 + $0x10c] sm:%s240] %v383
        %v385 = vld [vmem:[%s247 + $0x10c] sm:%s240]
        %386 = vst [vmem:[%s248 + $0x110] sm:%s240] %v385
        %v387 = vld [vmem:[%s247 + $0x118] sm:%s240]
        %388 = vst [vmem:[%s248 + $0x114] sm:%s240] %v387
        %v389 = vld [vmem:[%s247 + $0x110] sm:%s240]
        %390 = vst [vmem:[%s248 + $0x118] sm:%s240] %v389
        %v391 = vld [vmem:[%s247 + $0x11c] sm:%s240]
        %392 = vst [vmem:[%s248 + $0x11c] sm:%s240] %v391
        %v393 = vld [vmem:[%s247 + $0x120] sm:%s240]
        %394 = vst [vmem:[%s248 + $0x120] sm:%s240] %v393
        %v395 = vld [vmem:[%s247 + $0x12c] sm:%s240]
        %396 = vst [vmem:[%s248 + $0x124] sm:%s240] %v395
        %v397 = vld [vmem:[%s247 + $0x124] sm:%s240]
        %398 = vst [vmem:[%s248 + $0x128] sm:%s240] %v397
        %v399 = vld [vmem:[%s247 + $0x130] sm:%s240]
        %400 = vst [vmem:[%s248 + $0x12c] sm:%s240] %v399
        %v401 = vld [vmem:[%s247 + $0x128] sm:%s240]
        %402 = vst [vmem:[%s248 + $0x130] sm:%s240] %v401
        %v403 = vld [vmem:[%s247 + $0x134] sm:%s240]
        %404 = vst [vmem:[%s248 + $0x134] sm:%s240] %v403
        %v405 = vld [vmem:[%s247 + $0x138] sm:%s240]
        %406 = vst [vmem:[%s248 + $0x138] sm:%s240] %v405
        %v407 = vld [vmem:[%s247 + $0x144] sm:%s240]
        %408 = vst [vmem:[%s248 + $0x13c] sm:%s240] %v407
        %v409 = vld [vmem:[%s247 + $0x13c] sm:%s240]
        %410 = vst [vmem:[%s248 + $0x140] sm:%s240] %v409
        %v411 = vld [vmem:[%s247 + $0x148] sm:%s240]
        %412 = vst [vmem:[%s248 + $0x144] sm:%s240] %v411
        %v413 = vld [vmem:[%s247 + $0x140] sm:%s240]
        %414 = vst [vmem:[%s248 + $0x148] sm:%s240] %v413
        %v415 = vld [vmem:[%s247 + $0x14c] sm:%s240]
        %416 = vst [vmem:[%s248 + $0x14c] sm:%s240] %v415
        %v417 = vld [vmem:[%s247 + $0x150] sm:%s240]
        %418 = vst [vmem:[%s248 + $0x150] sm:%s240] %v417
        %v419 = vld [vmem:[%s247 + $0x15c] sm:%s240]
        %420 = vst [vmem:[%s248 + $0x154] sm:%s240] %v419
        %v421 = vld [vmem:[%s247 + $0x154] sm:%s240]
        %422 = vst [vmem:[%s248 + $0x158] sm:%s240] %v421
        %v423 = vld [vmem:[%s247 + $0x160] sm:%s240]
        %424 = vst [vmem:[%s248 + $0x15c] sm:%s240] %v423
        %v425 = vld [vmem:[%s247 + $0x158] sm:%s240]
        %426 = vst [vmem:[%s248 + $0x160] sm:%s240] %v425
        %v427 = vld [vmem:[%s247 + $0x164] sm:%s240]
        %428 = vst [vmem:[%s248 + $0x164] sm:%s240] %v427
        %v429 = vld [vmem:[%s247 + $0x168] sm:%s240]
        %430 = vst [vmem:[%s248 + $0x168] sm:%s240] %v429
        %v431 = vld [vmem:[%s247 + $0x174] sm:%s240]
        %432 = vst [vmem:[%s248 + $0x16c] sm:%s240] %v431
        %v433 = vld [vmem:[%s247 + $0x16c] sm:%s240]
        %434 = vst [vmem:[%s248 + $0x170] sm:%s240] %v433
        %v435 = vld [vmem:[%s247 + $0x178] sm:%s240]
        %436 = vst [vmem:[%s248 + $0x174] sm:%s240] %v435
        %v437 = vld [vmem:[%s247 + $0x170] sm:%s240]
        %438 = vst [vmem:[%s248 + $0x178] sm:%s240] %v437
        %v439 = vld [vmem:[%s247 + $0x17c] sm:%s240]
        %440 = vst [vmem:[%s248 + $0x17c] sm:%s240] %v439
      $region40: #{mask_branch_forward.1} parent=27 // loop_footer
        %s246 = sadd.s32 1, %s242
      $region41: #{mask_branch_forward.1} parent=27 // loop_footer_branch
        %241 = sbr.rel target = $region37
      $region42: #{mask_branch_forward.1} parent=27 // loop_exit
        _
    $region28: #{mask_branch_forward.1} parent=12 // pred_fallthru
      _
  $region13: #{mask_branch_forward.1} parent=0 // pred_fallthru
    _
  // Predicated region
  $region14: #{mask_branch_forward.1} parent=0 // pred_check
    %p18 = pneg %p14
  $region15: #{mask_branch_forward.1} parent=0 // pred_check_branch
    %20 = sbr.rel (%p18) target = $region17
  $region16: #{mask_branch_forward.1} parent=0 // pred_region
    %s21 = sshllo.u32 0, 4
    loop: start=0, step=1, limit=1
    $region18: #{mask_branch_forward.1} parent=16 // loop_pre_header
      _
    $region19: #{mask_branch_forward.1} parent=16 // loop_header
      %s23 = sphi 0, %s27
      %p24 = scmp.ge.s32.totalorder %s23, 1
      %s28 = sphi %s2, %s2
      %s29 = sphi [#allocation2], [#allocation2]
    $region20: #{mask_branch_forward.1} parent=16 // loop_header_branch
      %26 = sbr.rel (%p24) target = $region24
    $region21: #{mask_branch_forward.1} parent=16 // loop_body
      %v30 = vld [vmem:[%s28] sm:%s21]
      %31 = vst [vmem:[%s29] sm:%s21] %v30
      %v32 = vld [vmem:[%s28 + $0xc] sm:%s21]
      %33 = vst [vmem:[%s29 + $0x4] sm:%s21] %v32
      %v34 = vld [vmem:[%s28 + $0x4] sm:%s21]
      %35 = vst [vmem:[%s29 + $0x8] sm:%s21] %v34
      %v36 = vld [vmem:[%s28 + $0x10] sm:%s21]
      %37 = vst [vmem:[%s29 + $0xc] sm:%s21] %v36
      %v38 = vld [vmem:[%s28 + $0x8] sm:%s21]
      %39 = vst [vmem:[%s29 + $0x10] sm:%s21] %v38
      %v40 = vld [vmem:[%s28 + $0x14] sm:%s21]
      %41 = vst [vmem:[%s29 + $0x14] sm:%s21] %v40
      %v42 = vld [vmem:[%s28 + $0x18] sm:%s21]
      %43 = vst [vmem:[%s29 + $0x18] sm:%s21] %v42
      %v44 = vld [vmem:[%s28 + $0x24] sm:%s21]
      %45 = vst [vmem:[%s29 + $0x1c] sm:%s21] %v44
      %v46 = vld [vmem:[%s28 + $0x1c] sm:%s21]
      %47 = vst [vmem:[%s29 + $0x20] sm:%s21] %v46
      %v48 = vld [vmem:[%s28 + $0x28] sm:%s21]
      %49 = vst [vmem:[%s29 + $0x24] sm:%s21] %v48
      %v50 = vld [vmem:[%s28 + $0x20] sm:%s21]
      %51 = vst [vmem:[%s29 + $0x28] sm:%s21] %v50
      %v52 = vld [vmem:[%s28 + $0x2c] sm:%s21]
      %53 = vst [vmem:[%s29 + $0x2c] sm:%s21] %v52
      %v54 = vld [vmem:[%s28 + $0x30] sm:%s21]
      %55 = vst [vmem:[%s29 + $0x30] sm:%s21] %v54
      %v56 = vld [vmem:[%s28 + $0x3c] sm:%s21]
      %57 = vst [vmem:[%s29 + $0x34] sm:%s21] %v56
      %v58 = vld [vmem:[%s28 + $0x34] sm:%s21]
      %59 = vst [vmem:[%s29 + $0x38] sm:%s21] %v58
      %v60 = vld [vmem:[%s28 + $0x40] sm:%s21]
      %61 = vst [vmem:[%s29 + $0x3c] sm:%s21] %v60
      %v62 = vld [vmem:[%s28 + $0x38] sm:%s21]
      %63 = vst [vmem:[%s29 + $0x40] sm:%s21] %v62
      %v64 = vld [vmem:[%s28 + $0x44] sm:%s21]
      %65 = vst [vmem:[%s29 + $0x44] sm:%s21] %v64
      %v66 = vld [vmem:[%s28 + $0x48] sm:%s21]
      %67 = vst [vmem:[%s29 + $0x48] sm:%s21] %v66
      %v68 = vld [vmem:[%s28 + $0x54] sm:%s21]
      %69 = vst [vmem:[%s29 + $0x4c] sm:%s21] %v68
      %v70 = vld [vmem:[%s28 + $0x4c] sm:%s21]
      %71 = vst [vmem:[%s29 + $0x50] sm:%s21] %v70
      %v72 = vld [vmem:[%s28 + $0x58] sm:%s21]
      %73 = vst [vmem:[%s29 + $0x54] sm:%s21] %v72
      %v74 = vld [vmem:[%s28 + $0x50] sm:%s21]
      %75 = vst [vmem:[%s29 + $0x58] sm:%s21] %v74
      %v76 = vld [vmem:[%s28 + $0x5c] sm:%s21]
      %77 = vst [vmem:[%s29 + $0x5c] sm:%s21] %v76
      %v78 = vld [vmem:[%s28 + $0x60] sm:%s21]
      %79 = vst [vmem:[%s29 + $0x60] sm:%s21] %v78
      %v80 = vld [vmem:[%s28 + $0x6c] sm:%s21]
      %81 = vst [vmem:[%s29 + $0x64] sm:%s21] %v80
      %v82 = vld [vmem:[%s28 + $0x64] sm:%s21]
      %83 = vst [vmem:[%s29 + $0x68] sm:%s21] %v82
      %v84 = vld [vmem:[%s28 + $0x70] sm:%s21]
      %85 = vst [vmem:[%s29 + $0x6c] sm:%s21] %v84
      %v86 = vld [vmem:[%s28 + $0x68] sm:%s21]
      %87 = vst [vmem:[%s29 + $0x70] sm:%s21] %v86
      %v88 = vld [vmem:[%s28 + $0x74] sm:%s21]
      %89 = vst [vmem:[%s29 + $0x74] sm:%s21] %v88
      %v90 = vld [vmem:[%s28 + $0x78] sm:%s21]
      %91 = vst [vmem:[%s29 + $0x78] sm:%s21] %v90
      %v92 = vld [vmem:[%s28 + $0x84] sm:%s21]
      %93 = vst [vmem:[%s29 + $0x7c] sm:%s21] %v92
      %v94 = vld [vmem:[%s28 + $0x7c] sm:%s21]
      %95 = vst [vmem:[%s29 + $0x80] sm:%s21] %v94
      %v96 = vld [vmem:[%s28 + $0x88] sm:%s21]
      %97 = vst [vmem:[%s29 + $0x84] sm:%s21] %v96
      %v98 = vld [vmem:[%s28 + $0x80] sm:%s21]
      %99 = vst [vmem:[%s29 + $0x88] sm:%s21] %v98
      %v100 = vld [vmem:[%s28 + $0x8c] sm:%s21]
      %101 = vst [vmem:[%s29 + $0x8c] sm:%s21] %v100
      %v102 = vld [vmem:[%s28 + $0x90] sm:%s21]
      %103 = vst [vmem:[%s29 + $0x90] sm:%s21] %v102
      %v104 = vld [vmem:[%s28 + $0x9c] sm:%s21]
      %105 = vst [vmem:[%s29 + $0x94] sm:%s21] %v104
      %v106 = vld [vmem:[%s28 + $0x94] sm:%s21]
      %107 = vst [vmem:[%s29 + $0x98] sm:%s21] %v106
      %v108 = vld [vmem:[%s28 + $0xa0] sm:%s21]
      %109 = vst [vmem:[%s29 + $0x9c] sm:%s21] %v108
      %v110 = vld [vmem:[%s28 + $0x98] sm:%s21]
      %111 = vst [vmem:[%s29 + $0xa0] sm:%s21] %v110
      %v112 = vld [vmem:[%s28 + $0xa4] sm:%s21]
      %113 = vst [vmem:[%s29 + $0xa4] sm:%s21] %v112
      %v114 = vld [vmem:[%s28 + $0xa8] sm:%s21]
      %115 = vst [vmem:[%s29 + $0xa8] sm:%s21] %v114
      %v116 = vld [vmem:[%s28 + $0xb4] sm:%s21]
      %117 = vst [vmem:[%s29 + $0xac] sm:%s21] %v116
      %v118 = vld [vmem:[%s28 + $0xac] sm:%s21]
      %119 = vst [vmem:[%s29 + $0xb0] sm:%s21] %v118
      %v120 = vld [vmem:[%s28 + $0xb8] sm:%s21]
      %121 = vst [vmem:[%s29 + $0xb4] sm:%s21] %v120
      %v122 = vld [vmem:[%s28 + $0xb0] sm:%s21]
      %123 = vst [vmem:[%s29 + $0xb8] sm:%s21] %v122
      %v124 = vld [vmem:[%s28 + $0xbc] sm:%s21]
      %125 = vst [vmem:[%s29 + $0xbc] sm:%s21] %v124
      %v126 = vld [vmem:[%s28 + $0xc0] sm:%s21]
      %127 = vst [vmem:[%s29 + $0xc0] sm:%s21] %v126
      %v128 = vld [vmem:[%s28 + $0xcc] sm:%s21]
      %129 = vst [vmem:[%s29 + $0xc4] sm:%s21] %v128
      %v130 = vld [vmem:[%s28 + $0xc4] sm:%s21]
      %131 = vst [vmem:[%s29 + $0xc8] sm:%s21] %v130
      %v132 = vld [vmem:[%s28 + $0xd0] sm:%s21]
      %133 = vst [vmem:[%s29 + $0xcc] sm:%s21] %v132
      %v134 = vld [vmem:[%s28 + $0xc8] sm:%s21]
      %135 = vst [vmem:[%s29 + $0xd0] sm:%s21] %v134
      %v136 = vld [vmem:[%s28 + $0xd4] sm:%s21]
      %137 = vst [vmem:[%s29 + $0xd4] sm:%s21] %v136
      %v138 = vld [vmem:[%s28 + $0xd8] sm:%s21]
      %139 = vst [vmem:[%s29 + $0xd8] sm:%s21] %v138
      %v140 = vld [vmem:[%s28 + $0xe4] sm:%s21]
      %141 = vst [vmem:[%s29 + $0xdc] sm:%s21] %v140
      %v142 = vld [vmem:[%s28 + $0xdc] sm:%s21]
      %143 = vst [vmem:[%s29 + $0xe0] sm:%s21] %v142
      %v144 = vld [vmem:[%s28 + $0xe8] sm:%s21]
      %145 = vst [vmem:[%s29 + $0xe4] sm:%s21] %v144
      %v146 = vld [vmem:[%s28 + $0xe0] sm:%s21]
      %147 = vst [vmem:[%s29 + $0xe8] sm:%s21] %v146
      %v148 = vld [vmem:[%s28 + $0xec] sm:%s21]
      %149 = vst [vmem:[%s29 + $0xec] sm:%s21] %v148
      %v150 = vld [vmem:[%s28 + $0xf0] sm:%s21]
      %151 = vst [vmem:[%s29 + $0xf0] sm:%s21] %v150
      %v152 = vld [vmem:[%s28 + $0xfc] sm:%s21]
      %153 = vst [vmem:[%s29 + $0xf4] sm:%s21] %v152
      %v154 = vld [vmem:[%s28 + $0xf4] sm:%s21]
      %155 = vst [vmem:[%s29 + $0xf8] sm:%s21] %v154
      %v156 = vld [vmem:[%s28 + $0x100] sm:%s21]
      %157 = vst [vmem:[%s29 + $0xfc] sm:%s21] %v156
      %v158 = vld [vmem:[%s28 + $0xf8] sm:%s21]
      %159 = vst [vmem:[%s29 + $0x100] sm:%s21] %v158
      %v160 = vld [vmem:[%s28 + $0x104] sm:%s21]
      %161 = vst [vmem:[%s29 + $0x104] sm:%s21] %v160
      %v162 = vld [vmem:[%s28 + $0x108] sm:%s21]
      %163 = vst [vmem:[%s29 + $0x108] sm:%s21] %v162
      %v164 = vld [vmem:[%s28 + $0x114] sm:%s21]
      %165 = vst [vmem:[%s29 + $0x10c] sm:%s21] %v164
      %v166 = vld [vmem:[%s28 + $0x10c] sm:%s21]
      %167 = vst [vmem:[%s29 + $0x110] sm:%s21] %v166
      %v168 = vld [vmem:[%s28 + $0x118] sm:%s21]
      %169 = vst [vmem:[%s29 + $0x114] sm:%s21] %v168
      %v170 = vld [vmem:[%s28 + $0x110] sm:%s21]
      %171 = vst [vmem:[%s29 + $0x118] sm:%s21] %v170
      %v172 = vld [vmem:[%s28 + $0x11c] sm:%s21]
      %173 = vst [vmem:[%s29 + $0x11c] sm:%s21] %v172
      %v174 = vld [vmem:[%s28 + $0x120] sm:%s21]
      %175 = vst [vmem:[%s29 + $0x120] sm:%s21] %v174
      %v176 = vld [vmem:[%s28 + $0x12c] sm:%s21]
      %177 = vst [vmem:[%s29 + $0x124] sm:%s21] %v176
      %v178 = vld [vmem:[%s28 + $0x124] sm:%s21]
      %179 = vst [vmem:[%s29 + $0x128] sm:%s21] %v178
      %v180 = vld [vmem:[%s28 + $0x130] sm:%s21]
      %181 = vst [vmem:[%s29 + $0x12c] sm:%s21] %v180
      %v182 = vld [vmem:[%s28 + $0x128] sm:%s21]
      %183 = vst [vmem:[%s29 + $0x130] sm:%s21] %v182
      %v184 = vld [vmem:[%s28 + $0x134] sm:%s21]
      %185 = vst [vmem:[%s29 + $0x134] sm:%s21] %v184
      %v186 = vld [vmem:[%s28 + $0x138] sm:%s21]
      %187 = vst [vmem:[%s29 + $0x138] sm:%s21] %v186
      %v188 = vld [vmem:[%s28 + $0x144] sm:%s21]
      %189 = vst [vmem:[%s29 + $0x13c] sm:%s21] %v188
      %v190 = vld [vmem:[%s28 + $0x13c] sm:%s21]
      %191 = vst [vmem:[%s29 + $0x140] sm:%s21] %v190
      %v192 = vld [vmem:[%s28 + $0x148] sm:%s21]
      %193 = vst [vmem:[%s29 + $0x144] sm:%s21] %v192
      %v194 = vld [vmem:[%s28 + $0x140] sm:%s21]
      %195 = vst [vmem:[%s29 + $0x148] sm:%s21] %v194
      %v196 = vld [vmem:[%s28 + $0x14c] sm:%s21]
      %197 = vst [vmem:[%s29 + $0x14c] sm:%s21] %v196
      %v198 = vld [vmem:[%s28 + $0x150] sm:%s21]
      %199 = vst [vmem:[%s29 + $0x150] sm:%s21] %v198
      %v200 = vld [vmem:[%s28 + $0x15c] sm:%s21]
      %201 = vst [vmem:[%s29 + $0x154] sm:%s21] %v200
      %v202 = vld [vmem:[%s28 + $0x154] sm:%s21]
      %203 = vst [vmem:[%s29 + $0x158] sm:%s21] %v202
      %v204 = vld [vmem:[%s28 + $0x160] sm:%s21]
      %205 = vst [vmem:[%s29 + $0x15c] sm:%s21] %v204
      %v206 = vld [vmem:[%s28 + $0x158] sm:%s21]
      %207 = vst [vmem:[%s29 + $0x160] sm:%s21] %v206
      %v208 = vld [vmem:[%s28 + $0x164] sm:%s21]
      %209 = vst [vmem:[%s29 + $0x164] sm:%s21] %v208
      %v210 = vld [vmem:[%s28 + $0x168] sm:%s21]
      %211 = vst [vmem:[%s29 + $0x168] sm:%s21] %v210
      %v212 = vld [vmem:[%s28 + $0x174] sm:%s21]
      %213 = vst [vmem:[%s29 + $0x16c] sm:%s21] %v212
      %v214 = vld [vmem:[%s28 + $0x16c] sm:%s21]
      %215 = vst [vmem:[%s29 + $0x170] sm:%s21] %v214
      %v216 = vld [vmem:[%s28 + $0x178] sm:%s21]
      %217 = vst [vmem:[%s29 + $0x174] sm:%s21] %v216
      %v218 = vld [vmem:[%s28 + $0x170] sm:%s21]
      %219 = vst [vmem:[%s29 + $0x178] sm:%s21] %v218
      %v220 = vld [vmem:[%s28 + $0x17c] sm:%s21]
      %221 = vst [vmem:[%s29 + $0x17c] sm:%s21] %v220
    $region22: #{mask_branch_forward.1} parent=16 // loop_footer
      %s27 = sadd.s32 1, %s23
    $region23: #{mask_branch_forward.1} parent=16 // loop_footer_branch
      %22 = sbr.rel target = $region19
    $region24: #{mask_branch_forward.1} parent=16 // loop_exit
      _
  $region17: #{mask_branch_forward.1} parent=0 // pred_fallthru
    _
  // Predicated region
  $region43: #{mask_branch_forward.1} parent=0 // pred_check
    _
  $region44: #{mask_branch_forward.1} parent=0 // pred_check_branch
    %443 = sbr.rel (0) target = $region46
  $region45: #{mask_branch_forward.1} parent=0 // pred_region
    %444 = vsyncadd [#allocation3], 6144
  $region46: #{mask_branch_forward.1} parent=0 // pred_fallthru
    _
  %v445 = vld [vmem:[%s1] sm:$0xf]
  %v446 = vld [vmem:[%s0] sm:$0xff]
  %s447 = scalar_lea.vmem %s0, 8
  %v448 = vld [vmem:[%s447] sm:$0xff]
  %v450 = vcombine.high %v446, %v446
  %v453 = vcombine.high %v448, %v448
  %vm455 = vcmask 1043456
  %v456 = vsel %vm455, %v446, 0.0
  %v457 = vsel %vm455, %v450, 0.0
  %v458 = vadd.f32 %v456, %v457
  %v459 = vsel %vm455, %v448, 0.0
  %v460 = vadd.f32 %v458, %v459
  %v461 = vsel %vm455, %v453, 0.0
  %v462 = vadd.f32 %v460, %v461
  %463 = vadd.xlane.f32.xlu0 %v462
  %v464 = vpop.xlane.xlu0 %463
  %v465 = vmul.f32 %v446, %v446
  %v466 = vmul.f32 %v450, %v450
  %v467 = vmul.f32 %v448, %v448
  %v468 = vmul.f32 %v453, %v453
  %v469 = vsel %vm455, %v465, 0.0
  %v470 = vsel %vm455, %v466, 0.0
  %v471 = vadd.f32 %v469, %v470
  %v472 = vsel %vm455, %v467, 0.0
  %v473 = vadd.f32 %v471, %v472
  %v474 = vsel %vm455, %v468, 0.0
  %v475 = vadd.f32 %v473, %v474
  %476 = vadd.xlane.f32.xlu0 %v475
  %v477 = vpop.xlane.xlu0 %476
  %v478 = vmul.f32 %v464, 0.001953125
  %v479 = vmul.f32 %v477, 0.001953125
  %v480 = vmul.f32 %v478, %v478
  %v481 = vsub.f32 %v479, %v480
  %v482 = vadd.f32 %v481, 1e-05
  %v483 = vrsqrt.pop %v482
  %v484 = vmul.f32 %v445, %v483
  %v485 = vmul.f32 %v478, %v484
  %487 = vrot.lane.b32.xlu0 %v485, 1
  %v488 = vpop.permute.xlu0 %487
  %v490 = vsub.f32 %v445, %v488
  %492 = vset.pattern.permute.xlu0 4
  %493 = vperm.xlu0 %492, %v484
  %v494 = vpop.permute.xlu0 %493
  %v496 = vmul.f32 %v446, %v494
  %v497 = vmul.f32 %v450, %v494
  %v498 = vmul.f32 %v448, %v494
  %v499 = vmul.f32 %v453, %v494
  %501 = vset.pattern.permute.xlu0 5
  %502 = vperm.xlu0 %501, %v490
  %v503 = vpop.permute.xlu0 %502
  %v505 = vadd.f32 %v496, %v503
  %v506 = vadd.f32 %v497, %v503
  %v507 = vadd.f32 %v498, %v503
  %v508 = vadd.f32 %v499, %v503
  %v509 = vmax.f32 %v505, 0.0
  %v510 = vmax.f32 %v506, 0.0
  %v511 = vmax.f32 %v507, 0.0
  %v512 = vmax.f32 %v508, 0.0
  %514 = vset.pattern.permute.xlu0 0
  %515 = vperm.xlu0 %514, %v445
  %v516 = vpop.permute.xlu0 %515
  %v518 = vlaneseq
  %v519 = vshrl.u32 %v518, 7
  %v520 = vsub.s32 0, %v519
  %v521 = vrot.slane %v509, %v520
  %v522 = vlaneseq
  %v523 = vshrl.u32 %v522, 7
  %v524 = vsub.s32 0, %v523
  %v525 = vrot.slane %v510, %v524
  %v526 = vlaneseq
  %v527 = vshrl.u32 %v526, 7
  %v528 = vsub.s32 0, %v527
  %v529 = vrot.slane %v511, %v528
  %v530 = vlaneseq
  %v531 = vshrl.u32 %v530, 7
  %v532 = vsub.s32 0, %v531
  %v533 = vrot.slane %v512, %v532
  %v534 = vmul.f32 %v516, %v521
  %v535 = vmul.f32 %v516, %v525
  %v536 = vmul.f32 %v516, %v529
  %v537 = vmul.f32 %v516, %v533
  %538 = vset.pattern.permute.xlu0 6
  %539 = vperm.xlu0 %538, %v445
  %v540 = vpop.permute.xlu0 %539
  %v542 = vadd.f32 %v540, %v534
  %v543 = vadd.f32 %v540, %v535
  %v544 = vadd.f32 %v540, %v536
  %v545 = vadd.f32 %v540, %v537
  %546 = vset.pattern.permute.xlu0 1
  %547 = vperm.xlu0 %546, %v445
  %v548 = vpop.permute.xlu0 %547
  %v550 = vlaneseq
  %v551 = vshrl.u32 %v550, 7
  %v552 = vsub.s32 1, %v551
  %v553 = vrot.slane %v509, %v552
  %v554 = vlaneseq
  %v555 = vshrl.u32 %v554, 7
  %v556 = vsub.s32 1, %v555
  %v557 = vrot.slane %v510, %v556
  %v558 = vlaneseq
  %v559 = vshrl.u32 %v558, 7
  %v560 = vsub.s32 1, %v559
  %v561 = vrot.slane %v511, %v560
  %v562 = vlaneseq
  %v563 = vshrl.u32 %v562, 7
  %v564 = vsub.s32 1, %v563
  %v565 = vrot.slane %v512, %v564
  %v566 = vmul.f32 %v548, %v553
  %v567 = vmul.f32 %v548, %v557
  %v568 = vmul.f32 %v548, %v561
  %v569 = vmul.f32 %v548, %v565
  %v570 = vadd.f32 %v542, %v566
  %v571 = vadd.f32 %v543, %v567
  %v572 = vadd.f32 %v544, %v568
  %v573 = vadd.f32 %v545, %v569
  %574 = vset.pattern.permute.xlu0 2
  %575 = vperm.xlu0 %574, %v445
  %v576 = vpop.permute.xlu0 %575
  %v578 = vlaneseq
  %v579 = vshrl.u32 %v578, 7
  %v580 = vsub.s32 2, %v579
  %v581 = vrot.slane %v509, %v580
  %v582 = vlaneseq
  %v583 = vshrl.u32 %v582, 7
  %v584 = vsub.s32 2, %v583
  %v585 = vrot.slane %v510, %v584
  %v586 = vlaneseq
  %v587 = vshrl.u32 %v586, 7
  %v588 = vsub.s32 2, %v587
  %v589 = vrot.slane %v511, %v588
  %v590 = vlaneseq
  %v591 = vshrl.u32 %v590, 7
  %v592 = vsub.s32 2, %v591
  %v593 = vrot.slane %v512, %v592
  %v594 = vmul.f32 %v576, %v581
  %v595 = vmul.f32 %v576, %v585
  %v596 = vmul.f32 %v576, %v589
  %v597 = vmul.f32 %v576, %v593
  %v598 = vadd.f32 %v570, %v594
  %v599 = vadd.f32 %v571, %v595
  %v600 = vadd.f32 %v572, %v596
  %v601 = vadd.f32 %v573, %v597
  %602 = vset.pattern.permute.xlu0 3
  %603 = vperm.xlu0 %602, %v445
  %v604 = vpop.permute.xlu0 %603
  %v606 = vlaneseq
  %v607 = vshrl.u32 %v606, 7
  %v608 = vsub.s32 3, %v607
  %v609 = vrot.slane %v509, %v608
  %v610 = vlaneseq
  %v611 = vshrl.u32 %v610, 7
  %v612 = vsub.s32 3, %v611
  %v613 = vrot.slane %v510, %v612
  %v614 = vlaneseq
  %v615 = vshrl.u32 %v614, 7
  %v616 = vsub.s32 3, %v615
  %v617 = vrot.slane %v511, %v616
  %v618 = vlaneseq
  %v619 = vshrl.u32 %v618, 7
  %v620 = vsub.s32 3, %v619
  %v621 = vrot.slane %v512, %v620
  %v622 = vmul.f32 %v604, %v609
  %v623 = vmul.f32 %v604, %v613
  %v624 = vmul.f32 %v604, %v617
  %v625 = vmul.f32 %v604, %v621
  %v626 = vadd.f32 %v598, %v622
  %v627 = vadd.f32 %v599, %v623
  %v628 = vadd.f32 %v600, %v624
  %v629 = vadd.f32 %v601, %v625
  %v630 = vsel %vm455, %v626, 0.0
  %v631 = vsel %vm455, %v627, 0.0
  %v632 = vadd.f32 %v630, %v631
  %v633 = vsel %vm455, %v628, 0.0
  %v634 = vadd.f32 %v632, %v633
  %v635 = vsel %vm455, %v629, 0.0
  %v636 = vadd.f32 %v634, %v635
  %637 = vadd.xlane.f32.xlu0 %v636
  %v638 = vpop.xlane.xlu0 %637
  %v639 = vmul.f32 %v626, %v626
  %v640 = vmul.f32 %v627, %v627
  %v641 = vmul.f32 %v628, %v628
  %v642 = vmul.f32 %v629, %v629
  %v643 = vsel %vm455, %v639, 0.0
  %v644 = vsel %vm455, %v640, 0.0
  %v645 = vadd.f32 %v643, %v644
  %v646 = vsel %vm455, %v641, 0.0
  %v647 = vadd.f32 %v645, %v646
  %v648 = vsel %vm455, %v642, 0.0
  %v649 = vadd.f32 %v647, %v648
  %650 = vadd.xlane.f32.xlu0 %v649
  %v651 = vpop.xlane.xlu0 %650
  %v652 = vmul.f32 %v638, 0.001953125
  %v653 = vmul.f32 %v651, 0.001953125
  %v654 = vmul.f32 %v652, %v652
  %v655 = vsub.f32 %v653, %v654
  %v656 = vadd.f32 %v655, 1e-05
  %v657 = vrsqrt.pop %v656
  %v658 = vmul.f32 %v445, %v657
  %v659 = vmul.f32 %v652, %v658
  %661 = vrot.lane.b32.xlu0 %v659, 1
  %v662 = vpop.permute.xlu0 %661
  %v664 = vsub.f32 %v445, %v662
  %666 = vset.pattern.permute.xlu0 4
  %667 = vperm.xlu0 %666, %v658
  %v668 = vpop.permute.xlu0 %667
  %v670 = vmul.f32 %v626, %v668
  %v671 = vmul.f32 %v627, %v668
  %v672 = vmul.f32 %v628, %v668
  %v673 = vmul.f32 %v629, %v668
  %675 = vset.pattern.permute.xlu0 5
  %676 = vperm.xlu0 %675, %v664
  %v677 = vpop.permute.xlu0 %676
  %v679 = vadd.f32 %v670, %v677
  %v680 = vadd.f32 %v671, %v677
  %v681 = vadd.f32 %v672, %v677
  %v682 = vadd.f32 %v673, %v677
  %v683 = vmax.f32 %v679, 0.0
  %v684 = vmax.f32 %v680, 0.0
  %v685 = vmax.f32 %v681, 0.0
  %v686 = vmax.f32 %v682, 0.0
  %v687 = vlaneseq
  %v688 = vshrl.u32 %v687, 7
  %v689 = vsub.s32 0, %v688
  %v690 = vrot.slane %v683, %v689
  %v691 = vlaneseq
  %v692 = vshrl.u32 %v691, 7
  %v693 = vsub.s32 0, %v692
  %v694 = vrot.slane %v684, %v693
  %v695 = vlaneseq
  %v696 = vshrl.u32 %v695, 7
  %v697 = vsub.s32 0, %v696
  %v698 = vrot.slane %v685, %v697
  %v699 = vlaneseq
  %v700 = vshrl.u32 %v699, 7
  %v701 = vsub.s32 0, %v700
  %v702 = vrot.slane %v686, %v701
  %v703 = vmul.f32 %v516, %v690
  %v704 = vmul.f32 %v516, %v694
  %v705 = vmul.f32 %v516, %v698
  %v706 = vmul.f32 %v516, %v702
  %v707 = vadd.f32 %v540, %v703
  %v708 = vadd.f32 %v540, %v704
  %v709 = vadd.f32 %v540, %v705
  %v710 = vadd.f32 %v540, %v706
  %v711 = vlaneseq
  %v712 = vshrl.u32 %v711, 7
  %v713 = vsub.s32 1, %v712
  %v714 = vrot.slane %v683, %v713
  %v715 = vlaneseq
  %v716 = vshrl.u32 %v715, 7
  %v717 = vsub.s32 1, %v716
  %v718 = vrot.slane %v684, %v717
  %v719 = vlaneseq
  %v720 = vshrl.u32 %v719, 7
  %v721 = vsub.s32 1, %v720
  %v722 = vrot.slane %v685, %v721
  %v723 = vlaneseq
  %v724 = vshrl.u32 %v723, 7
  %v725 = vsub.s32 1, %v724
  %v726 = vrot.slane %v686, %v725
  %v727 = vmul.f32 %v548, %v714
  %v728 = vmul.f32 %v548, %v718
  %v729 = vmul.f32 %v548, %v722
  %v730 = vmul.f32 %v548, %v726
  %v731 = vadd.f32 %v707, %v727
  %v732 = vadd.f32 %v708, %v728
  %v733 = vadd.f32 %v709, %v729
  %v734 = vadd.f32 %v710, %v730
  %v735 = vlaneseq
  %v736 = vshrl.u32 %v735, 7
  %v737 = vsub.s32 2, %v736
  %v738 = vrot.slane %v683, %v737
  %v739 = vlaneseq
  %v740 = vshrl.u32 %v739, 7
  %v741 = vsub.s32 2, %v740
  %v742 = vrot.slane %v684, %v741
  %v743 = vlaneseq
  %v744 = vshrl.u32 %v743, 7
  %v745 = vsub.s32 2, %v744
  %v746 = vrot.slane %v685, %v745
  %v747 = vlaneseq
  %v748 = vshrl.u32 %v747, 7
  %v749 = vsub.s32 2, %v748
  %v750 = vrot.slane %v686, %v749
  %v751 = vmul.f32 %v576, %v738
  %v752 = vmul.f32 %v576, %v742
  %v753 = vmul.f32 %v576, %v746
  %v754 = vmul.f32 %v576, %v750
  %v755 = vadd.f32 %v731, %v751
  %v756 = vadd.f32 %v732, %v752
  %v757 = vadd.f32 %v733, %v753
  %v758 = vadd.f32 %v734, %v754
  %v759 = vlaneseq
  %v760 = vshrl.u32 %v759, 7
  %v761 = vsub.s32 3, %v760
  %v762 = vrot.slane %v683, %v761
  %v763 = vlaneseq
  %v764 = vshrl.u32 %v763, 7
  %v765 = vsub.s32 3, %v764
  %v766 = vrot.slane %v684, %v765
  %v767 = vlaneseq
  %v768 = vshrl.u32 %v767, 7
  %v769 = vsub.s32 3, %v768
  %v770 = vrot.slane %v685, %v769
  %v771 = vlaneseq
  %v772 = vshrl.u32 %v771, 7
  %v773 = vsub.s32 3, %v772
  %v774 = vrot.slane %v686, %v773
  %v775 = vmul.f32 %v604, %v762
  %v776 = vmul.f32 %v604, %v766
  %v777 = vmul.f32 %v604, %v770
  %v778 = vmul.f32 %v604, %v774
  %v779 = vadd.f32 %v755, %v775
  %v780 = vadd.f32 %v756, %v776
  %v781 = vadd.f32 %v757, %v777
  %v782 = vadd.f32 %v758, %v778
  %v783 = vsel %vm455, %v779, 0.0
  %v784 = vsel %vm455, %v780, 0.0
  %v785 = vadd.f32 %v783, %v784
  %v786 = vsel %vm455, %v781, 0.0
  %v787 = vadd.f32 %v785, %v786
  %v788 = vsel %vm455, %v782, 0.0
  %v789 = vadd.f32 %v787, %v788
  %790 = vadd.xlane.f32.xlu0 %v789
  %v791 = vpop.xlane.xlu0 %790
  %v792 = vmul.f32 %v779, %v779
  %v793 = vmul.f32 %v780, %v780
  %v794 = vmul.f32 %v781, %v781
  %v795 = vmul.f32 %v782, %v782
  %v796 = vsel %vm455, %v792, 0.0
  %v797 = vsel %vm455, %v793, 0.0
  %v798 = vadd.f32 %v796, %v797
  %v799 = vsel %vm455, %v794, 0.0
  %v800 = vadd.f32 %v798, %v799
  %v801 = vsel %vm455, %v795, 0.0
  %v802 = vadd.f32 %v800, %v801
  %803 = vadd.xlane.f32.xlu0 %v802
  %v804 = vpop.xlane.xlu0 %803
  %v805 = vmul.f32 %v791, 0.001953125
  %v806 = vmul.f32 %v804, 0.001953125
  %v807 = vmul.f32 %v805, %v805
  %v808 = vsub.f32 %v806, %v807
  %v809 = vadd.f32 %v808, 1e-05
  %v810 = vrsqrt.pop %v809
  %v811 = vmul.f32 %v445, %v810
  %v812 = vmul.f32 %v805, %v811
  %814 = vrot.lane.b32.xlu0 %v812, 1
  %v815 = vpop.permute.xlu0 %814
  %v817 = vsub.f32 %v445, %v815
  %819 = vset.pattern.permute.xlu0 4
  %820 = vperm.xlu0 %819, %v811
  %v821 = vpop.permute.xlu0 %820
  %v823 = vmul.f32 %v779, %v821
  %v824 = vmul.f32 %v780, %v821
  %v825 = vmul.f32 %v781, %v821
  %v826 = vmul.f32 %v782, %v821
  %828 = vset.pattern.permute.xlu0 5
  %829 = vperm.xlu0 %828, %v817
  %v830 = vpop.permute.xlu0 %829
  %v832 = vadd.f32 %v823, %v830
  %v833 = vadd.f32 %v824, %v830
  %v834 = vadd.f32 %v825, %v830
  %v835 = vadd.f32 %v826, %v830
  %v836 = vmax.f32 %v832, 0.0
  %v837 = vmax.f32 %v833, 0.0
  %v838 = vmax.f32 %v834, 0.0
  %v839 = vmax.f32 %v835, 0.0
  %v840 = vlaneseq
  %v841 = vshrl.u32 %v840, 7
  %v842 = vsub.s32 0, %v841
  %v843 = vrot.slane %v836, %v842
  %v844 = vlaneseq
  %v845 = vshrl.u32 %v844, 7
  %v846 = vsub.s32 0, %v845
  %v847 = vrot.slane %v837, %v846
  %v848 = vlaneseq
  %v849 = vshrl.u32 %v848, 7
  %v850 = vsub.s32 0, %v849
  %v851 = vrot.slane %v838, %v850
  %v852 = vlaneseq
  %v853 = vshrl.u32 %v852, 7
  %v854 = vsub.s32 0, %v853
  %v855 = vrot.slane %v839, %v854
  %v856 = vmul.f32 %v516, %v843
  %v857 = vmul.f32 %v516, %v847
  %v858 = vmul.f32 %v516, %v851
  %v859 = vmul.f32 %v516, %v855
  %v860 = vadd.f32 %v540, %v856
  %v861 = vadd.f32 %v540, %v857
  %v862 = vadd.f32 %v540, %v858
  %v863 = vadd.f32 %v540, %v859
  %v864 = vlaneseq
  %v865 = vshrl.u32 %v864, 7
  %v866 = vsub.s32 1, %v865
  %v867 = vrot.slane %v836, %v866
  %v868 = vlaneseq
  %v869 = vshrl.u32 %v868, 7
  %v870 = vsub.s32 1, %v869
  %v871 = vrot.slane %v837, %v870
  %v872 = vlaneseq
  %v873 = vshrl.u32 %v872, 7
  %v874 = vsub.s32 1, %v873
  %v875 = vrot.slane %v838, %v874
  %v876 = vlaneseq
  %v877 = vshrl.u32 %v876, 7
  %v878 = vsub.s32 1, %v877
  %v879 = vrot.slane %v839, %v878
  %v880 = vmul.f32 %v548, %v867
  %v881 = vmul.f32 %v548, %v871
  %v882 = vmul.f32 %v548, %v875
  %v883 = vmul.f32 %v548, %v879
  %v884 = vadd.f32 %v860, %v880
  %v885 = vadd.f32 %v861, %v881
  %v886 = vadd.f32 %v862, %v882
  %v887 = vadd.f32 %v863, %v883
  %v888 = vlaneseq
  %v889 = vshrl.u32 %v888, 7
  %v890 = vsub.s32 2, %v889
  %v891 = vrot.slane %v836, %v890
  %v892 = vlaneseq
  %v893 = vshrl.u32 %v892, 7
  %v894 = vsub.s32 2, %v893
  %v895 = vrot.slane %v837, %v894
  %v896 = vlaneseq
  %v897 = vshrl.u32 %v896, 7
  %v898 = vsub.s32 2, %v897
  %v899 = vrot.slane %v838, %v898
  %v900 = vlaneseq
  %v901 = vshrl.u32 %v900, 7
  %v902 = vsub.s32 2, %v901
  %v903 = vrot.slane %v839, %v902
  %v904 = vmul.f32 %v576, %v891
  %v905 = vmul.f32 %v576, %v895
  %v906 = vmul.f32 %v576, %v899
  %v907 = vmul.f32 %v576, %v903
  %v908 = vadd.f32 %v884, %v904
  %v909 = vadd.f32 %v885, %v905
  %v910 = vadd.f32 %v886, %v906
  %v911 = vadd.f32 %v887, %v907
  %v912 = vlaneseq
  %v913 = vshrl.u32 %v912, 7
  %v914 = vsub.s32 3, %v913
  %v915 = vrot.slane %v836, %v914
  %v916 = vlaneseq
  %v917 = vshrl.u32 %v916, 7
  %v918 = vsub.s32 3, %v917
  %v919 = vrot.slane %v837, %v918
  %v920 = vlaneseq
  %v921 = vshrl.u32 %v920, 7
  %v922 = vsub.s32 3, %v921
  %v923 = vrot.slane %v838, %v922
  %v924 = vlaneseq
  %v925 = vshrl.u32 %v924, 7
  %v926 = vsub.s32 3, %v925
  %v927 = vrot.slane %v839, %v926
  %v928 = vmul.f32 %v604, %v915
  %v929 = vmul.f32 %v604, %v919
  %v930 = vmul.f32 %v604, %v923
  %v931 = vmul.f32 %v604, %v927
  %v932 = vadd.f32 %v908, %v928
  %v933 = vadd.f32 %v909, %v929
  %v934 = vadd.f32 %v910, %v930
  %v935 = vadd.f32 %v911, %v931
  %v936 = vadd.f32 %v932, %v446
  %v937 = vadd.f32 %v933, %v450
  %v938 = vadd.f32 %v934, %v448
  %v939 = vadd.f32 %v935, %v453
  %v942 = vrot.slane %v938, 4
  %v943 = vrot.slane %v939, 4
  %v946 = vsel %vm455, %v936, %v942
  %v947 = vsel %vm455, %v937, %v943
  %s948 = smul.u32 4, 32
  %s949 = smul.u32 %s948, 3
  %s950 = sshll.u32 %s949, 4
  %951 = dma.done [#allocation3], %s950
  %v952 = vpack.c.bf16 %v946, %v946
  %v953 = vpack.c.bf16 %v947, %v947
  %v954 = vld [vmem:[#allocation2] sm:$0xff]
  %v955 = vld [vmem:[#allocation2 + $0x8] sm:$0xff]
  %v956 = vld [vmem:[#allocation2 + $0x10] sm:$0xff]
  %v957 = vld [vmem:[#allocation2 + $0x18] sm:$0xff]
  %v958 = vld [vmem:[#allocation2 + $0x20] sm:$0xff]
  %v959 = vld [vmem:[#allocation2 + $0x28] sm:$0xff]
  %v960 = vld [vmem:[#allocation2 + $0x30] sm:$0xff]
  %v961 = vld [vmem:[#allocation2 + $0x38] sm:$0xff]
  %v962 = vld [vmem:[#allocation2 + $0x40] sm:$0xff]
  %v963 = vld [vmem:[#allocation2 + $0x48] sm:$0xff]
  %v964 = vld [vmem:[#allocation2 + $0x50] sm:$0xff]
  %v965 = vld [vmem:[#allocation2 + $0x58] sm:$0xff]
  %v966 = vld [vmem:[#allocation2 + $0x60] sm:$0xff]
  %v967 = vld [vmem:[#allocation2 + $0x68] sm:$0xff]
  %v968 = vld [vmem:[#allocation2 + $0x70] sm:$0xff]
  %v969 = vld [vmem:[#allocation2 + $0x78] sm:$0xff]
  %v970 = vld [vmem:[#allocation2 + $0x80] sm:$0xff]
  %v971 = vld [vmem:[#allocation2 + $0x88] sm:$0xff]
  %v972 = vld [vmem:[#allocation2 + $0x90] sm:$0xff]
  %v973 = vld [vmem:[#allocation2 + $0x98] sm:$0xff]
  %v974 = vld [vmem:[#allocation2 + $0xa0] sm:$0xff]
  %v975 = vld [vmem:[#allocation2 + $0xa8] sm:$0xff]
  %v976 = vld [vmem:[#allocation2 + $0xb0] sm:$0xff]
  %v977 = vld [vmem:[#allocation2 + $0xb8] sm:$0xff]
  %v978 = vld [vmem:[#allocation2 + $0xc0] sm:$0xff]
  %v979 = vld [vmem:[#allocation2 + $0xc8] sm:$0xff]
  %v980 = vld [vmem:[#allocation2 + $0xd0] sm:$0xff]
  %v981 = vld [vmem:[#allocation2 + $0xd8] sm:$0xff]
  %v982 = vld [vmem:[#allocation2 + $0xe0] sm:$0xff]
  %v983 = vld [vmem:[#allocation2 + $0xe8] sm:$0xff]
  %v984 = vld [vmem:[#allocation2 + $0xf0] sm:$0xff]
  %v985 = vld [vmem:[#allocation2 + $0xf8] sm:$0xff]
  %v986 = vld [vmem:[#allocation2 + $0x100] sm:$0xff]
  %v987 = vld [vmem:[#allocation2 + $0x108] sm:$0xff]
  %v988 = vld [vmem:[#allocation2 + $0x110] sm:$0xff]
  %v989 = vld [vmem:[#allocation2 + $0x118] sm:$0xff]
  %v990 = vld [vmem:[#allocation2 + $0x120] sm:$0xff]
  %v991 = vld [vmem:[#allocation2 + $0x128] sm:$0xff]
  %v992 = vld [vmem:[#allocation2 + $0x130] sm:$0xff]
  %v993 = vld [vmem:[#allocation2 + $0x138] sm:$0xff]
  %v994 = vld [vmem:[#allocation2 + $0x140] sm:$0xff]
  %v995 = vld [vmem:[#allocation2 + $0x148] sm:$0xff]
  %v996 = vld [vmem:[#allocation2 + $0x150] sm:$0xff]
  %v997 = vld [vmem:[#allocation2 + $0x158] sm:$0xff]
  %v998 = vld [vmem:[#allocation2 + $0x160] sm:$0xff]
  %v999 = vld [vmem:[#allocation2 + $0x168] sm:$0xff]
  %v1000 = vld [vmem:[#allocation2 + $0x170] sm:$0xff]
  %v1001 = vld [vmem:[#allocation2 + $0x178] sm:$0xff]
  %1002 = vmatprep.subr.bf16.mxu0 %v955
  %1003 = vmatpush1.bf16.msra.mxu0 %v954
  %1004 = vmatprep.subr.bf16.mxu0 %v958
  %1005 = vmatpush1.bf16.msra.mxu0 %v957
  %1006 = vmatprep.subr.bf16.mxu0 %v961
  %1007 = vmatpush1.bf16.msra.mxu0 %v960
  %1008 = vmatprep.subr.bf16.mxu0 %v964
  %1009 = vmatpush1.bf16.msra.mxu0 %v963
  %1010 = vmatprep.subr.bf16.mxu0 %v967
  %1011 = vmatpush1.bf16.msra.mxu0 %v966
  %1012 = vmatprep.subr.bf16.mxu0 %v970
  %1013 = vmatpush1.bf16.msra.mxu0 %v969
  %1014 = vmatprep.subr.bf16.mxu0 %v973
  %1015 = vmatpush1.bf16.msra.mxu0 %v972
  %1016 = vmatprep.subr.bf16.mxu0 %v976
  %1017 = vmatpush1.bf16.msra.mxu0 %v975
  %1018 = vmatprep.subr.bf16.mxu0 %v979
  %1019 = vmatpush1.bf16.msra.mxu0 %v978
  %1020 = vmatprep.subr.bf16.mxu0 %v982
  %1021 = vmatpush1.bf16.msra.mxu0 %v981
  %1022 = vmatprep.subr.bf16.mxu0 %v985
  %1023 = vmatpush1.bf16.msra.mxu0 %v984
  %1024 = vmatprep.subr.bf16.mxu0 %v988
  %1025 = vmatpush1.bf16.msra.mxu0 %v987
  %1026 = vmatprep.subr.bf16.mxu0 %v991
  %1027 = vmatpush1.bf16.msra.mxu0 %v990
  %1028 = vmatprep.subr.bf16.mxu0 %v994
  %1029 = vmatpush1.bf16.msra.mxu0 %v993
  %1030 = vmatprep.subr.bf16.mxu0 %v997
  %1031 = vmatpush1.bf16.msra.mxu0 %v996
  %1032 = vmatprep.subr.bf16.mxu0 %v1000
  %1033 = vmatpush1.bf16.msra.mxu0 %v999
  %1034 = vmatprep.mubr.bf16.mxu0 %v953
  %1035 = vmatmul.mubr.bf16.gmra.mrb[0].mxu0 %v952
  %v1036 = vpop.f32.mrb[0].mxu0
  %v1037 = vadd.f32 0.0, %v1036
  %v1038 = vpop.f32.mrb[0].mxu0
  %v1039 = vadd.f32 0.0, %v1038
  %v1040 = vpop.f32.mrb[0].mxu0
  %v1041 = vpop.f32.mrb[0].mxu0
  %1042 = vdwg.mxu0
  %1043 = vmatprep.subr.bf16.mxu0 0
  %1044 = vmatpush1.bf16.msra.mxu0 %v956
  %1045 = vmatprep.subr.bf16.mxu0 0
  %1046 = vmatpush1.bf16.msra.mxu0 %v959
  %1047 = vmatprep.subr.bf16.mxu0 0
  %1048 = vmatpush1.bf16.msra.mxu0 %v962
  %1049 = vmatprep.subr.bf16.mxu0 0
  %1050 = vmatpush1.bf16.msra.mxu0 %v965
  %1051 = vmatprep.subr.bf16.mxu0 0
  %1052 = vmatpush1.bf16.msra.mxu0 %v968
  %1053 = vmatprep.subr.bf16.mxu0 0
  %1054 = vmatpush1.bf16.msra.mxu0 %v971
  %1055 = vmatprep.subr.bf16.mxu0 0
  %1056 = vmatpush1.bf16.msra.mxu0 %v974
  %1057 = vmatprep.subr.bf16.mxu0 0
  %1058 = vmatpush1.bf16.msra.mxu0 %v977
  %1059 = vmatprep.subr.bf16.mxu0 0
  %1060 = vmatpush1.bf16.msra.mxu0 %v980
  %1061 = vmatprep.subr.bf16.mxu0 0
  %1062 = vmatpush1.bf16.msra.mxu0 %v983
  %1063 = vmatprep.subr.bf16.mxu0 0
  %1064 = vmatpush1.bf16.msra.mxu0 %v986
  %1065 = vmatprep.subr.bf16.mxu0 0
  %1066 = vmatpush1.bf16.msra.mxu0 %v989
  %1067 = vmatprep.subr.bf16.mxu0 0
  %1068 = vmatpush1.bf16.msra.mxu0 %v992
  %1069 = vmatprep.subr.bf16.mxu0 0
  %1070 = vmatpush1.bf16.msra.mxu0 %v995
  %1071 = vmatprep.subr.bf16.mxu0 0
  %1072 = vmatpush1.bf16.msra.mxu0 %v998
  %1073 = vmatprep.subr.bf16.mxu0 0
  %1074 = vmatpush1.bf16.msra.mxu0 %v1001
  %1075 = vmatprep.mubr.bf16.mxu0 %v953
  %1076 = vmatmul.mubr.bf16.gmra.mrb[0].mxu0 %v952
  %v1077 = vpop.f32.mrb[0].mxu0
  %v1078 = vadd.f32 0.0, %v1077
  %v1079 = vpop.f32.mrb[0].mxu0
  %v1080 = vpop.f32.mrb[0].mxu0
  %v1081 = vpop.f32.mrb[0].mxu0
  %1082 = vdwg.mxu0
  %1083 = vst [vmem:[%s3] sm:$0xff] %v1037
  %1084 = vst [vmem:[%s3 + $0x8] sm:$0xff] %v1039
  %vm1085 = vcmask 859136
  %1086 = vst.msk [vmem:[%s3 + $0x10] sm:$0xff] %vm1085, %v1078
  // Predicated region
  $region47: #{mask_branch_forward.1} parent=0 // pred_check
    _
  $region48: #{mask_branch_forward.1} parent=0 // pred_check_branch
    %1088 = sbr.rel (0) target = $region50
  $region49: #{mask_branch_forward.1} parent=0 // pred_region
    _
  $region50: #{mask_branch_forward.1} parent=0 // pred_fallthru
    _
  // Predicated region
  $region51: #{mask_branch_forward.1} parent=0 // pred_check
    _
  $region52: #{mask_branch_forward.1} parent=0 // pred_check_branch
    %1090 = sbr.rel (0) target = $region54
  $region53: #{mask_branch_forward.1} parent=0 // pred_region
    _
  $region54: #{mask_branch_forward.1} parent=0 // pred_fallthru
    _
  %1091 = vsyncmov [#allocation3]
  %s1092 = vpop.sfrf %1091
  %p1093 = scmp.eq.s32.totalorder %s1092, 0
  %p1094 = pneg %p1093
  %1096 = shalt.err (%p1094)

</llo_original>
